<compile_context>
chip_gen: v5e
topology: v5e:2x2
jax: 0.10.0
libtpu: 0.0.40
codegen_flags: <defaults>
</compile_context>

<pallas_src>
import functools

import jax
import jax.numpy as jnp
from jax.experimental import pallas as pl
from jax.experimental.pallas import tpu as pltpu

LANE = 128  # TPU lane width


# ----------------------------------------------------------------------------
# Small helpers
# ----------------------------------------------------------------------------
def _round_up(n, m):
    return ((n + m - 1) // m) * m


def _cdiv(a, b):
    return -(-a // b)


def _vmem_capacity_bytes():
    """Physical VMEM per TensorCore; conservative 64 MiB fallback."""
    try:
        cap = int(getattr(pltpu.get_tpu_info(), "vmem_capacity_bytes"))
        if cap > 0:
            return cap
    except Exception:
        pass
    return 64 << 20  # assume the smallest (v7x-class) if we cannot query


def _choose_batch_tile(B, sublane_mult, target, min_steps):
    """Batch tile: multiple of sublane_mult, roughly <= target, and (whenever
    B allows splitting) an even grid of at least `min_steps` steps so both v7x
    TensorCores get equal work and DMA/writeback overlap with compute."""
    if B <= sublane_mult:
        return sublane_mult
    steps = max(min_steps, _cdiv(B, target))
    if steps % 2:
        steps += 1  # even step count -> equal work per TensorCore
    tile = _round_up(_cdiv(B, steps), sublane_mult)
    return max(min(tile, _round_up(B, sublane_mult)), sublane_mult)


# ----------------------------------------------------------------------------
# Kernel
# ----------------------------------------------------------------------------
def usad_encoder_kernel(x_ref, w1_ref, b1_ref, w2_ref, b2_ref, w3_ref, b3_ref,
                        out_ref, *, precision):
    # In-kernel cast of x to the weight dtype (rides a free VPU slot; avoids a
    # wrapper-side astype that would cost a full extra HBM pass over x).
    x = x_ref[...].astype(w1_ref.dtype)

    # Linear1 + ReLU  (MXU matmul with f32 accumulation, elementwise in f32).
    h = jnp.dot(x, w1_ref[...], preferred_element_type=jnp.float32,
                precision=precision)
    h = jnp.maximum(h + b1_ref[...], 0.0)          # biases stored in f32
    h = h.astype(w2_ref.dtype)

    # Linear2 + ReLU
    h = jnp.dot(h, w2_ref[...], preferred_element_type=jnp.float32,
                precision=precision)
    h = jnp.maximum(h + b2_ref[...], 0.0)
    h = h.astype(w3_ref.dtype)

    # Linear3 + ReLU
    z = jnp.dot(h, w3_ref[...], preferred_element_type=jnp.float32,
                precision=precision)
    z = jnp.maximum(z + b3_ref[...], 0.0)

    out_ref[...] = z.astype(out_ref.dtype)


# ----------------------------------------------------------------------------
# Wrapper
# ----------------------------------------------------------------------------
def usad_encoder(x, params, latent_size, *, batch_tile=None, precision=None):
    """x: (B, in_size). params: padded dict w1,b1,w2,b2,w3,b3 (see init_params).

    Returns (B, latent_size) in the weight dtype.
    """
    B, in_size = x.shape
    w_dtype = params["w1"].dtype
    assert params["w1"].shape[0] == in_size
    h1p = params["w1"].shape[1]
    h2p = params["w2"].shape[1]
    latp = params["w3"].shape[1]
    assert h1p % LANE == 0 and h2p % LANE == 0 and latp % LANE == 0

    x_itemsize = jnp.dtype(x.dtype).itemsize
    w_itemsize = jnp.dtype(w_dtype).itemsize
    # Packed (2-byte) dtypes want a 16-row sublane multiple on their blocks.
    sublane_mult = 16 if min(x_itemsize, w_itemsize) == 2 else 8

    # --- Per-generation VMEM budget (v7x: 64 MiB physical -> ~56 MiB cap).
    vmem_phys = _vmem_capacity_bytes()
    vmem_cap = (vmem_phys * 7) // 8
    small_vmem = vmem_phys <= (64 << 20)
    tile_target = 512 if small_vmem else 1024
    min_steps = 4 if small_vmem else 2

    weight_bytes = sum(int(p.size) * jnp.dtype(p.dtype).itemsize
                       for p in params.values())

    def footprint(tile, weight_buffers):
        f = 2 * tile * in_size * x_itemsize            # x (double-buffered)
        f += 2 * tile * latp * w_itemsize              # out (double-buffered)
        f += weight_buffers * weight_bytes             # resident weights/biases
        f += tile * (h1p + h2p + latp) * 4             # f32 intermediates
        if x_itemsize != w_itemsize:
            f += tile * in_size * w_itemsize           # in-kernel cast copy of x
        return int(f * 1.25)                           # regalloc / spill headroom

    # Guard the "all weights resident in VMEM" assumption.
    if footprint(sublane_mult, 1) > vmem_cap:
        # TODO(synk): add a K-/fan_out-tiled fallback (extra "arbitrary" grid
        # axis + f32 accumulator scratch) for encoders whose weights exceed VMEM.
        raise ValueError(
            f"UsadEncoder weights ({weight_bytes / 2**20:.1f} MiB) plus the "
            f"minimal batch tile exceed the VMEM budget "
            f"({vmem_cap / 2**20:.1f} MiB); use bf16 parameters or a smaller "
            "encoder.")

    # --- Pick / validate the batch tile, then shrink it if VMEM demands.
    if batch_tile is None:
        batch_tile = _choose_batch_tile(B, sublane_mult, tile_target, min_steps)
    else:
        assert batch_tile % sublane_mult == 0, (
            f"batch_tile must be a multiple of {sublane_mult}")
    while batch_tile > sublane_mult and footprint(batch_tile, 1) > vmem_cap:
        batch_tile = max((batch_tile // 2 // sublane_mult) * sublane_mult,
                         sublane_mult)

    # --- Zero-pad the batch so the tile always divides it (no grid=1 collapse
    #     for awkward batch sizes); padded rows are sliced off at the end.
    B_pad = _round_up(B, batch_tile)
    if B_pad != B:
        x = jnp.pad(x, ((0, B_pad - B), (0, 0)))
    grid = (B_pad // batch_tile,)

    # --- Advisory cost estimate for the XLA scheduler.
    flops = 2 * B_pad * (in_size * h1p + h1p * h2p + h2p * latp)
    bytes_accessed = (B_pad * in_size * x_itemsize
                      + B_pad * latp * w_itemsize + weight_bytes)
    cost = pl.CostEstimate(flops=int(flops), transcendentals=0,
                           bytes_accessed=int(bytes_accessed))

    kernel = functools.partial(usad_encoder_kernel, precision=precision)

    def build_and_call(weight_buffers):
        # Weights/biases: constant block index -> logically resident across
        # grid steps.  With Buffered(1) the unused second buffer is dropped.
        wkwargs = ({} if weight_buffers == 2
                   else {"pipeline_mode": pl.Buffered(1)})

        def wspec(*shape):
            return pl.BlockSpec(shape, lambda i, _s=shape: (0,) * len(_s),
                                **wkwargs)

        vmem_limit = int(min(max(footprint(batch_tile, weight_buffers),
                                 32 << 20), vmem_cap))
        return pl.pallas_call(
            kernel,
            out_shape=jax.ShapeDtypeStruct((B_pad, latp), w_dtype),
            grid_spec=pltpu.PrefetchScalarGridSpec(
                num_scalar_prefetch=0,
                grid=grid,
                in_specs=[
                    pl.BlockSpec((batch_tile, in_size), lambda i: (i, 0)),  # x
                    wspec(in_size, h1p),   # w1
                    wspec(1, h1p),         # b1 (f32)
                    wspec(h1p, h2p),       # w2
                    wspec(1, h2p),         # b2 (f32)
                    wspec(h2p, latp),      # w3
                    wspec(1, latp),        # b3 (f32)
                ],
                out_specs=pl.BlockSpec((batch_tile, latp), lambda i: (i, 0)),
            ),
            compiler_params=pltpu.CompilerParams(
                dimension_semantics=("parallel",),
                vmem_limit_bytes=vmem_limit),
            cost_estimate=cost,
        )(x, params["w1"], params["b1"], params["w2"], params["b2"],
          params["w3"], params["b3"])

    try:
        out = build_and_call(weight_buffers=1)
    except Exception:
        # Fallback for jax builds where pipeline_mode=pl.Buffered(1) is not
        # supported on a pallas_call BlockSpec: plain double-buffered weights.
        out = build_and_call(weight_buffers=2)

    # Drop padded rows and zero-padded latent columns (single XLA slice).  For
    # latent << 128, consumers that can fuse the slice may prefer the padded,
    # lane-dense (B_pad, latp) output directly.
    return out[:B, :latent_size]


# ----------------------------------------------------------------------------
# Parameter init (nn.Linear-style) with lane padding
# ----------------------------------------------------------------------------
def init_params(key, in_size, latent_size, dtype=jnp.float32):
    """U(-1/sqrt(fan_in), 1/sqrt(fan_in)) init, torch nn.Linear style.

    Weights are stored as (fan_in, fan_out) (transposed vs torch) and all
    fan_out dims are zero-padded to multiples of 128; padded weight rows and
    bias columns are zero, so padded lanes stay exactly zero through every
    ReLU and the math matches the unpadded module.  Biases are kept in f32
    (tiny) so the kernel's bias-add needs no casts.  On v6e/v7x, bf16 weight
    `dtype` is recommended (halves weight DMA and feeds the bf16 MXU).
    """
    h1, h2 = in_size // 2, in_size // 4
    dims = [(in_size, h1), (h1, h2), (h2, latent_size)]
    params = {}
    fan_in_pad = in_size  # input feature dim is not padded
    for idx, (fan_in, fan_out) in enumerate(dims, start=1):
        key, kw, kb = jax.random.split(key, 3)
        bound = 1.0 / (fan_in ** 0.5)
        w = jax.random.uniform(kw, (fan_in, fan_out), jnp.float32, -bound, bound)
        b = jax.random.uniform(kb, (fan_out,), jnp.float32, -bound, bound)
        fan_out_pad = _round_up(fan_out, LANE)
        w_pad = jnp.zeros((fan_in_pad, fan_out_pad), jnp.float32)
        w_pad = w_pad.at[:fan_in, :fan_out].set(w)
        b_pad = jnp.zeros((1, fan_out_pad), jnp.float32)
        b_pad = b_pad.at[0, :fan_out].set(b)
        params[f"w{idx}"] = w_pad.astype(dtype)
        params[f"b{idx}"] = b_pad                    # biases stay f32
        fan_in_pad = fan_out_pad
    return params


def usad_encoder_ref(x, p, latent_size):
    """Pure-JAX f32 reference on the (padded) params."""
    x = x.astype(jnp.float32)
    w1, b1 = p["w1"].astype(jnp.float32), p["b1"].astype(jnp.float32)
    w2, b2 = p["w2"].astype(jnp.float32), p["b2"].astype(jnp.float32)
    w3, b3 = p["w3"].astype(jnp.float32), p["b3"].astype(jnp.float32)
    h = jnp.maximum(x @ w1 + b1, 0.0)
    h = jnp.maximum(h @ w2 + b2, 0.0)
    z = jnp.maximum(h @ w3 + b3, 0.0)
    return z[:, :latent_size]


# ----------------------------------------------------------------------------
# Tests
# ----------------------------------------------------------------------------
if __name__ == "__main__":
    key = jax.random.PRNGKey(0)
    k_params, k_x, k_x2, k_x3 = jax.random.split(key, 4)

    # --- Test 1: f32, tiny module-consistent shape (single grid step).
    batch, in_size, latent_size = 8, 32, 8
    params = init_params(k_params, in_size, latent_size, dtype=jnp.float32)
    x = jax.random.normal(k_x, (batch, in_size), jnp.float32)
    z = jax.block_until_ready(usad_encoder(x, params, latent_size))
    z_ref = usad_encoder_ref(x, params, latent_size)
    assert z.shape == (batch, latent_size)
    assert jnp.allclose(z, z_ref, atol=1e-4, rtol=1e-4)

    # --- Test 2: f32, awkward batch (not tile-divisible) -> padded rows,
    #     multi-step pipelined grid chosen automatically.
    batch2, in2, lat2 = 100, 64, 16
    params2 = init_params(k_params, in2, lat2, dtype=jnp.float32)
    x2 = jax.random.normal(k_x2, (batch2, in2), jnp.float32)
    z2 = jax.block_until_ready(usad_encoder(x2, params2, lat2))
    z2_ref = usad_encoder_ref(x2, params2, lat2)
    assert z2.shape == (batch2, lat2)
    assert jnp.allclose(z2, z2_ref, atol=1e-4, rtol=1e-4)

    # --- Test 3: bf16 weights / f32 input (in-kernel cast) / f32 accumulation,
    #     explicit batch tile -> 4-step grid.
    batch3 = 64
    params3 = init_params(k_params, in2, lat2, dtype=jnp.bfloat16)
    x3 = jax.random.normal(k_x3, (batch3, in2), jnp.float32)
    z3 = jax.block_until_ready(usad_encoder(x3, params3, lat2, batch_tile=16))
    z3_ref = usad_encoder_ref(x3, params2, lat2)   # f32-parameter reference
    assert z3.shape == (batch3, lat2)
    assert jnp.allclose(z3.astype(jnp.float32), z3_ref, atol=5e-2, rtol=5e-2)

    print("KERNEL_OK")
</pallas_src>

<mosaic_0001>
module attributes {stable_mosaic.version = 11 : i64} {
  func.func @usad_encoder_kernel(%arg0: i32, %arg1: memref<8x32xf32, #tpu.memory_space<vmem>>, %arg2: memref<32x128xf32, #tpu.memory_space<vmem>>, %arg3: memref<1x128xf32, #tpu.memory_space<vmem>>, %arg4: memref<128x128xf32, #tpu.memory_space<vmem>>, %arg5: memref<1x128xf32, #tpu.memory_space<vmem>>, %arg6: memref<128x128xf32, #tpu.memory_space<vmem>>, %arg7: memref<1x128xf32, #tpu.memory_space<vmem>>, %arg8: memref<8x128xf32, #tpu.memory_space<vmem>>) attributes {dimension_semantics = [#tpu.dimension_semantics<parallel>], iteration_bounds = array<i64: 1>, scalar_prefetch = 0 : i64, scratch_operands = 0 : i64, tpu.core_type = #tpu.core_type<tc>, window_params = [{transform_indices = @transform_0, window_bounds = array<i64: 8, 32>}, {pipeline_mode = #tpu.pipeline_mode<synchronous>, transform_indices = @transform_1, window_bounds = array<i64: 32, 128>}, {pipeline_mode = #tpu.pipeline_mode<synchronous>, transform_indices = @transform_2, window_bounds = array<i64: 1, 128>}, {pipeline_mode = #tpu.pipeline_mode<synchronous>, transform_indices = @transform_3, window_bounds = array<i64: 128, 128>}, {pipeline_mode = #tpu.pipeline_mode<synchronous>, transform_indices = @transform_4, window_bounds = array<i64: 1, 128>}, {pipeline_mode = #tpu.pipeline_mode<synchronous>, transform_indices = @transform_5, window_bounds = array<i64: 128, 128>}, {pipeline_mode = #tpu.pipeline_mode<synchronous>, transform_indices = @transform_6, window_bounds = array<i64: 1, 128>}, {transform_indices = @transform_7, window_bounds = array<i64: 8, 128>}]} {
    %c0 = arith.constant 0 : index
    %c0_0 = arith.constant 0 : index
    %0 = vector.load %arg1[%c0, %c0_0] : memref<8x32xf32, #tpu.memory_space<vmem>>, vector<8x32xf32>
    %c0_1 = arith.constant 0 : index
    %c0_2 = arith.constant 0 : index
    %1 = vector.load %arg2[%c0_1, %c0_2] : memref<32x128xf32, #tpu.memory_space<vmem>>, vector<32x128xf32>
    %cst = arith.constant dense<0.000000e+00> : vector<8x128xf32>
    %2 = tpu.matmul %0, %1, %cst {dimension_numbers = #tpu.dot_dimension_numbers<[1], [0], [0], [1], [0, 0, 1, 1], [], []>} : vector<8x32xf32>, vector<32x128xf32>, vector<8x128xf32> -> vector<8x128xf32>
    %c0_3 = arith.constant 0 : index
    %c0_4 = arith.constant 0 : index
    %3 = vector.load %arg3[%c0_3, %c0_4] : memref<1x128xf32, #tpu.memory_space<vmem>>, vector<1x128xf32>
    %4 = vector.broadcast %3 : vector<1x128xf32> to vector<8x128xf32>
    %5 = arith.addf %2, %4 : vector<8x128xf32>
    %cst_5 = arith.constant 0.000000e+00 : f32
    %6 = vector.broadcast %cst_5 : f32 to vector<8x128xf32>
    %7 = arith.maximumf %5, %6 : vector<8x128xf32>
    %c0_6 = arith.constant 0 : index
    %c0_7 = arith.constant 0 : index
    %8 = vector.load %arg4[%c0_6, %c0_7] : memref<128x128xf32, #tpu.memory_space<vmem>>, vector<128x128xf32>
    %cst_8 = arith.constant dense<0.000000e+00> : vector<8x128xf32>
    %9 = tpu.matmul %7, %8, %cst_8 {dimension_numbers = #tpu.dot_dimension_numbers<[1], [0], [0], [1], [0, 0, 1, 1], [], []>} : vector<8x128xf32>, vector<128x128xf32>, vector<8x128xf32> -> vector<8x128xf32>
    %c0_9 = arith.constant 0 : index
    %c0_10 = arith.constant 0 : index
    %10 = vector.load %arg5[%c0_9, %c0_10] : memref<1x128xf32, #tpu.memory_space<vmem>>, vector<1x128xf32>
    %11 = vector.broadcast %10 : vector<1x128xf32> to vector<8x128xf32>
    %12 = arith.addf %9, %11 : vector<8x128xf32>
    %cst_11 = arith.constant 0.000000e+00 : f32
    %13 = vector.broadcast %cst_11 : f32 to vector<8x128xf32>
    %14 = arith.maximumf %12, %13 : vector<8x128xf32>
    %c0_12 = arith.constant 0 : index
    %c0_13 = arith.constant 0 : index
    %15 = vector.load %arg6[%c0_12, %c0_13] : memref<128x128xf32, #tpu.memory_space<vmem>>, vector<128x128xf32>
    %cst_14 = arith.constant dense<0.000000e+00> : vector<8x128xf32>
    %16 = tpu.matmul %14, %15, %cst_14 {dimension_numbers = #tpu.dot_dimension_numbers<[1], [0], [0], [1], [0, 0, 1, 1], [], []>} : vector<8x128xf32>, vector<128x128xf32>, vector<8x128xf32> -> vector<8x128xf32>
    %c0_15 = arith.constant 0 : index
    %c0_16 = arith.constant 0 : index
    %17 = vector.load %arg7[%c0_15, %c0_16] : memref<1x128xf32, #tpu.memory_space<vmem>>, vector<1x128xf32>
    %18 = vector.broadcast %17 : vector<1x128xf32> to vector<8x128xf32>
    %19 = arith.addf %16, %18 : vector<8x128xf32>
    %cst_17 = arith.constant 0.000000e+00 : f32
    %20 = vector.broadcast %cst_17 : f32 to vector<8x128xf32>
    %21 = arith.maximumf %19, %20 : vector<8x128xf32>
    %c0_18 = arith.constant 0 : index
    %c0_19 = arith.constant 0 : index
    %22 = vector.load %arg8[%c0_18, %c0_19] : memref<8x128xf32, #tpu.memory_space<vmem>>, vector<8x128xf32>
    tpu.vector_store %arg8[%c0_18, %c0_19], %21 {strides = array<i32>} : memref<8x128xf32, #tpu.memory_space<vmem>>, vector<8x128xf32>,
    return
  }
  func.func @transform_0(%arg0: i32) -> (i32, i32) {
    %c0_i32 = arith.constant 0 : i32
    %c0_i32_0 = arith.constant 0 : i32
    return %arg0, %c0_i32 : i32, i32
  }
  func.func @transform_1(%arg0: i32) -> (i32, i32) {
    %c0_i32 = arith.constant 0 : i32
    %c0_i32_0 = arith.constant 0 : i32
    %c0_i32_1 = arith.constant 0 : i32
    return %c0_i32, %c0_i32_0 : i32, i32
  }
  func.func @transform_2(%arg0: i32) -> (i32, i32) {
    %c0_i32 = arith.constant 0 : i32
    %c0_i32_0 = arith.constant 0 : i32
    %c0_i32_1 = arith.constant 0 : i32
    return %c0_i32, %c0_i32_0 : i32, i32
  }
  func.func @transform_3(%arg0: i32) -> (i32, i32) {
    %c0_i32 = arith.constant 0 : i32
    %c0_i32_0 = arith.constant 0 : i32
    %c0_i32_1 = arith.constant 0 : i32
    return %c0_i32, %c0_i32_0 : i32, i32
  }
  func.func @transform_4(%arg0: i32) -> (i32, i32) {
    %c0_i32 = arith.constant 0 : i32
    %c0_i32_0 = arith.constant 0 : i32
    %c0_i32_1 = arith.constant 0 : i32
    return %c0_i32, %c0_i32_0 : i32, i32
  }
  func.func @transform_5(%arg0: i32) -> (i32, i32) {
    %c0_i32 = arith.constant 0 : i32
    %c0_i32_0 = arith.constant 0 : i32
    %c0_i32_1 = arith.constant 0 : i32
    return %c0_i32, %c0_i32_0 : i32, i32
  }
  func.func @transform_6(%arg0: i32) -> (i32, i32) {
    %c0_i32 = arith.constant 0 : i32
    %c0_i32_0 = arith.constant 0 : i32
    %c0_i32_1 = arith.constant 0 : i32
    return %c0_i32, %c0_i32_0 : i32, i32
  }
  func.func @transform_7(%arg0: i32) -> (i32, i32) {
    %c0_i32 = arith.constant 0 : i32
    %c0_i32_0 = arith.constant 0 : i32
    return %arg0, %c0_i32 : i32, i32
  }
}

module attributes {stable_mosaic.version = 11 : i64} {
  func.func @usad_encoder_kernel(%arg0: i32, %arg1: memref<8x32xf32, #tpu.memory_space<vmem>>, %arg2: memref<32x128xf32, #tpu.memory_space<vmem>>, %arg3: memref<1x128xf32, #tpu.memory_space<vmem>>, %arg4: memref<128x128xf32, #tpu.memory_space<vmem>>, %arg5: memref<1x128xf32, #tpu.memory_space<vmem>>, %arg6: memref<128x128xf32, #tpu.memory_space<vmem>>, %arg7: memref<1x128xf32, #tpu.memory_space<vmem>>, %arg8: memref<8x128xf32, #tpu.memory_space<vmem>>) attributes {dimension_semantics = [#tpu.dimension_semantics<parallel>], iteration_bounds = array<i64: 1>, scalar_prefetch = 0 : i64, scratch_operands = 0 : i64, tpu.core_type = #tpu.core_type<tc>, window_params = [{transform_indices = @transform_0, window_bounds = array<i64: 8, 32>}, {pipeline_mode = #tpu.pipeline_mode<synchronous>, transform_indices = @transform_1, window_bounds = array<i64: 32, 128>}, {pipeline_mode = #tpu.pipeline_mode<synchronous>, transform_indices = @transform_2, window_bounds = array<i64: 1, 128>}, {pipeline_mode = #tpu.pipeline_mode<synchronous>, transform_indices = @transform_3, window_bounds = array<i64: 128, 128>}, {pipeline_mode = #tpu.pipeline_mode<synchronous>, transform_indices = @transform_4, window_bounds = array<i64: 1, 128>}, {pipeline_mode = #tpu.pipeline_mode<synchronous>, transform_indices = @transform_5, window_bounds = array<i64: 128, 128>}, {pipeline_mode = #tpu.pipeline_mode<synchronous>, transform_indices = @transform_6, window_bounds = array<i64: 1, 128>}, {transform_indices = @transform_7, window_bounds = array<i64: 8, 128>}]} {
    %c0 = arith.constant 0 : index
    %c0_0 = arith.constant 0 : index
    %0 = vector.load %arg1[%c0, %c0_0] : memref<8x32xf32, #tpu.memory_space<vmem>>, vector<8x32xf32>
    %c0_1 = arith.constant 0 : index
    %c0_2 = arith.constant 0 : index
    %1 = vector.load %arg2[%c0_1, %c0_2] : memref<32x128xf32, #tpu.memory_space<vmem>>, vector<32x128xf32>
    %cst = arith.constant dense<0.000000e+00> : vector<8x128xf32>
    %2 = tpu.matmul %0, %1, %cst {dimension_numbers = #tpu.dot_dimension_numbers<[1], [0], [0], [1], [0, 0, 1, 1], [], []>} : vector<8x32xf32>, vector<32x128xf32>, vector<8x128xf32> -> vector<8x128xf32>
    %c0_3 = arith.constant 0 : index
    %c0_4 = arith.constant 0 : index
    %3 = vector.load %arg3[%c0_3, %c0_4] : memref<1x128xf32, #tpu.memory_space<vmem>>, vector<1x128xf32>
    %4 = vector.broadcast %3 : vector<1x128xf32> to vector<8x128xf32>
    %5 = arith.addf %2, %4 : vector<8x128xf32>
    %cst_5 = arith.constant 0.000000e+00 : f32
    %6 = vector.broadcast %cst_5 : f32 to vector<8x128xf32>
    %7 = arith.maximumf %5, %6 : vector<8x128xf32>
    %c0_6 = arith.constant 0 : index
    %c0_7 = arith.constant 0 : index
    %8 = vector.load %arg4[%c0_6, %c0_7] : memref<128x128xf32, #tpu.memory_space<vmem>>, vector<128x128xf32>
    %cst_8 = arith.constant dense<0.000000e+00> : vector<8x128xf32>
    %9 = tpu.matmul %7, %8, %cst_8 {dimension_numbers = #tpu.dot_dimension_numbers<[1], [0], [0], [1], [0, 0, 1, 1], [], []>} : vector<8x128xf32>, vector<128x128xf32>, vector<8x128xf32> -> vector<8x128xf32>
    %c0_9 = arith.constant 0 : index
    %c0_10 = arith.constant 0 : index
    %10 = vector.load %arg5[%c0_9, %c0_10] : memref<1x128xf32, #tpu.memory_space<vmem>>, vector<1x128xf32>
    %11 = vector.broadcast %10 : vector<1x128xf32> to vector<8x128xf32>
    %12 = arith.addf %9, %11 : vector<8x128xf32>
    %cst_11 = arith.constant 0.000000e+00 : f32
    %13 = vector.broadcast %cst_11 : f32 to vector<8x128xf32>
    %14 = arith.maximumf %12, %13 : vector<8x128xf32>
    %c0_12 = arith.constant 0 : index
    %c0_13 = arith.constant 0 : index
    %15 = vector.load %arg6[%c0_12, %c0_13] : memref<128x128xf32, #tpu.memory_space<vmem>>, vector<128x128xf32>
    %cst_14 = arith.constant dense<0.000000e+00> : vector<8x128xf32>
    %16 = tpu.matmul %14, %15, %cst_14 {dimension_numbers = #tpu.dot_dimension_numbers<[1], [0], [0], [1], [0, 0, 1, 1], [], []>} : vector<8x128xf32>, vector<128x128xf32>, vector<8x128xf32> -> vector<8x128xf32>
    %c0_15 = arith.constant 0 : index
    %c0_16 = arith.constant 0 : index
    %17 = vector.load %arg7[%c0_15, %c0_16] : memref<1x128xf32, #tpu.memory_space<vmem>>, vector<1x128xf32>
    %18 = vector.broadcast %17 : vector<1x128xf32> to vector<8x128xf32>
    %19 = arith.addf %16, %18 : vector<8x128xf32>
    %cst_17 = arith.constant 0.000000e+00 : f32
    %20 = vector.broadcast %cst_17 : f32 to vector<8x128xf32>
    %21 = arith.maximumf %19, %20 : vector<8x128xf32>
    %c0_18 = arith.constant 0 : index
    %c0_19 = arith.constant 0 : index
    %22 = vector.load %arg8[%c0_18, %c0_19] : memref<8x128xf32, #tpu.memory_space<vmem>>, vector<8x128xf32>
    tpu.vector_store %arg8[%c0_18, %c0_19], %21 {strides = array<i32>} : memref<8x128xf32, #tpu.memory_space<vmem>>, vector<8x128xf32>,
    return
  }
  func.func @transform_0(%arg0: i32) -> (i32, i32) {
    %c0_i32 = arith.constant 0 : i32
    %c0_i32_0 = arith.constant 0 : i32
    return %arg0, %c0_i32 : i32, i32
  }
  func.func @transform_1(%arg0: i32) -> (i32, i32) {
    %c0_i32 = arith.constant 0 : i32
    %c0_i32_0 = arith.constant 0 : i32
    %c0_i32_1 = arith.constant 0 : i32
    return %c0_i32, %c0_i32_0 : i32, i32
  }
  func.func @transform_2(%arg0: i32) -> (i32, i32) {
    %c0_i32 = arith.constant 0 : i32
    %c0_i32_0 = arith.constant 0 : i32
    %c0_i32_1 = arith.constant 0 : i32
    return %c0_i32, %c0_i32_0 : i32, i32
  }
  func.func @transform_3(%arg0: i32) -> (i32, i32) {
    %c0_i32 = arith.constant 0 : i32
    %c0_i32_0 = arith.constant 0 : i32
    %c0_i32_1 = arith.constant 0 : i32
    return %c0_i32, %c0_i32_0 : i32, i32
  }
  func.func @transform_4(%arg0: i32) -> (i32, i32) {
    %c0_i32 = arith.constant 0 : i32
    %c0_i32_0 = arith.constant 0 : i32
    %c0_i32_1 = arith.constant 0 : i32
    return %c0_i32, %c0_i32_0 : i32, i32
  }
  func.func @transform_5(%arg0: i32) -> (i32, i32) {
    %c0_i32 = arith.constant 0 : i32
    %c0_i32_0 = arith.constant 0 : i32
    %c0_i32_1 = arith.constant 0 : i32
    return %c0_i32, %c0_i32_0 : i32, i32
  }
  func.func @transform_6(%arg0: i32) -> (i32, i32) {
    %c0_i32 = arith.constant 0 : i32
    %c0_i32_0 = arith.constant 0 : i32
    %c0_i32_1 = arith.constant 0 : i32
    return %c0_i32, %c0_i32_0 : i32, i32
  }
  func.func @transform_7(%arg0: i32) -> (i32, i32) {
    %c0_i32 = arith.constant 0 : i32
    %c0_i32_0 = arith.constant 0 : i32
    return %arg0, %c0_i32 : i32, i32
  }
}

</mosaic_0001>

<llo_original>
// kernel: tpu_custom_call.1
$region0: #{tpu_custom_call.1}
  #allocation0 [shape = 'u32[]', space=smem, size = 0x4, offset = 0x4, fixed_abs, tag = 'smem constant byte address 0x4 - core index']
  #allocation1 [shape = 'u32[72,128]{1,0:T(1,128)}', space=vmem, size = 0x9000, scoped, tag = 'internal scratch']
  %s0 = inlined_call_operand.hbm [shape: f32[8,32], index: 0, kind: input, shape index: {}]
  %s1 = inlined_call_operand.hbm [shape: f32[32,128], index: 1, kind: input, shape index: {}]
  %s2 = inlined_call_operand.vmem [shape: f32[1,128], index: 2, kind: input, shape index: {}]
  %s3 = inlined_call_operand.hbm [shape: f32[128,128], index: 3, kind: input, shape index: {}]
  %s4 = inlined_call_operand.vmem [shape: f32[1,128], index: 4, kind: input, shape index: {}]
  %s5 = inlined_call_operand.hbm [shape: f32[128,128], index: 5, kind: input, shape index: {}]
  %s6 = inlined_call_operand.vmem [shape: f32[1,128], index: 6, kind: input, shape index: {}]
  %s7 = inlined_call_operand.hbm [shape: f32[8,128], index: 7, kind: output, shape index: {}]
  %s8 = sld [smem:[#allocation0]]
  $region54: #{tpu_custom_call.1} parent=0
    _
  %s10 = ssub.s32 1, %s8
  %s11 = scalar_select 0, %s10, %s8
  $region1: #{tpu_custom_call.1} parent=0
    #allocation2 [shape = 'u8[4096]{0}', space=vmem, size = 0x1000, scoped, tag = 'input window, operand 0, single buffered']
    #allocation3 [shape = 's32[1]{0}', space=sflag, size = 0x4, scoped, tag = 'scoped memory for tpu_custom_call.1']
    #allocation4 [shape = 's32[1]{0}', space=sflag, size = 0x4, scoped, tag = 'scoped memory for tpu_custom_call.1']
    #allocation5 [shape = 'u8[16384]{0}', space=vmem, size = 0x4000, scoped, tag = 'input window, operand 1, single buffered']
    #allocation6 [shape = 's32[1]{0}', space=sflag, size = 0x4, scoped, tag = 'scoped memory for tpu_custom_call.1']
    #allocation7 [shape = 'u8[65536]{0}', space=vmem, size = 0x10000, scoped, tag = 'input window, operand 3, single buffered']
    #allocation8 [shape = 'u8[65536]{0}', space=vmem, size = 0x10000, scoped, tag = 'input window, operand 5, single buffered']
    #allocation9 [shape = 's32[1]{0}', space=sflag, size = 0x4, scoped, tag = 'scoped memory for tpu_custom_call.1']
    #allocation10 [shape = 'u8[4096]{0}', space=vmem, size = 0x1000, scoped, tag = 'output window, operand 0, single buffered']
    %12 = vsyncpa [#allocation3], 0
    %13 = vsyncpa [#allocation6], 0
    %14 = vsyncpa [#allocation9], 0
    %15 = vsyncpa [#allocation4], 0
    // Predicated region
    $region2: #{tpu_custom_call.1} parent=1 // pred_check
      _
    $region3: #{tpu_custom_call.1} parent=1 // pred_check_branch
      %17 = sbr.rel (0) target = $region5
    $region4: #{tpu_custom_call.1} parent=1 // pred_region
      %19 = vsyncadd [#allocation3], 0
      %s21 = sshll.u32 %s0, 4
      %s22 = int_to_ptr.hbm [resolvable:$true] %s21
      %s23 = sshll.u32 [#allocation2], 4
      %s24 = int_to_ptr.vmem [resolvable:$true] %s23
      %26 = dma.hbm_to_vmem [thread:$0]  %s22, 128, %s24, [#allocation3]
    $region5: #{tpu_custom_call.1} parent=1 // pred_fallthru
      _
    // Predicated region
    $region6: #{tpu_custom_call.1} parent=1 // pred_check
      _
    $region7: #{tpu_custom_call.1} parent=1 // pred_check_branch
      %28 = sbr.rel (0) target = $region9
    $region8: #{tpu_custom_call.1} parent=1 // pred_region
      %30 = vsyncadd [#allocation6], 0
      %s31 = sshll.u32 %s1, 4
      %s32 = int_to_ptr.hbm [resolvable:$true] %s31
      %s33 = sshll.u32 [#allocation5], 4
      %s34 = int_to_ptr.vmem [resolvable:$true] %s33
      %39 = dma.hbm_to_vmem [thread:$0]  %s32, 512, %s34, [#allocation6], 128, 128, 8
    $region9: #{tpu_custom_call.1} parent=1 // pred_fallthru
      _
    // Predicated region
    $region10: #{tpu_custom_call.1} parent=1 // pred_check
      _
    $region11: #{tpu_custom_call.1} parent=1 // pred_check_branch
      %41 = sbr.rel (0) target = $region13
    $region12: #{tpu_custom_call.1} parent=1 // pred_region
      _
    $region13: #{tpu_custom_call.1} parent=1 // pred_fallthru
      _
    // Predicated region
    $region14: #{tpu_custom_call.1} parent=1 // pred_check
      _
    $region15: #{tpu_custom_call.1} parent=1 // pred_check_branch
      %43 = sbr.rel (0) target = $region17
    $region16: #{tpu_custom_call.1} parent=1 // pred_region
      %45 = vsyncadd [#allocation6], 0
      %s46 = sshll.u32 %s3, 4
      %s47 = int_to_ptr.hbm [resolvable:$true] %s46
      %s48 = sshll.u32 [#allocation7], 4
      %s49 = int_to_ptr.vmem [resolvable:$true] %s48
      %54 = dma.hbm_to_vmem [thread:$0]  %s47, 2048, %s49, [#allocation6], 128, 128, 8
    $region17: #{tpu_custom_call.1} parent=1 // pred_fallthru
      _
    // Predicated region
    $region18: #{tpu_custom_call.1} parent=1 // pred_check
      _
    $region19: #{tpu_custom_call.1} parent=1 // pred_check_branch
      %56 = sbr.rel (0) target = $region21
    $region20: #{tpu_custom_call.1} parent=1 // pred_region
      _
    $region21: #{tpu_custom_call.1} parent=1 // pred_fallthru
      _
    // Predicated region
    $region22: #{tpu_custom_call.1} parent=1 // pred_check
      _
    $region23: #{tpu_custom_call.1} parent=1 // pred_check_branch
      %58 = sbr.rel (0) target = $region25
    $region24: #{tpu_custom_call.1} parent=1 // pred_region
      %60 = vsyncadd [#allocation9], 0
      %s61 = sshll.u32 %s5, 4
      %s62 = int_to_ptr.hbm [resolvable:$true] %s61
      %s63 = sshll.u32 [#allocation8], 4
      %s64 = int_to_ptr.vmem [resolvable:$true] %s63
      %69 = dma.hbm_to_vmem [thread:$0]  %s62, 2048, %s64, [#allocation9], 128, 128, 8
    $region25: #{tpu_custom_call.1} parent=1 // pred_fallthru
      _
    // Predicated region
    $region26: #{tpu_custom_call.1} parent=1 // pred_check
      _
    $region27: #{tpu_custom_call.1} parent=1 // pred_check_branch
      %71 = sbr.rel (0) target = $region29
    $region28: #{tpu_custom_call.1} parent=1 // pred_region
      _
    $region29: #{tpu_custom_call.1} parent=1 // pred_fallthru
      _
    // Predicated region
    $region30: #{tpu_custom_call.1} parent=1 // pred_check
      _
    $region31: #{tpu_custom_call.1} parent=1 // pred_check_branch
      %73 = sbr.rel (0) target = $region33
    $region32: #{tpu_custom_call.1} parent=1 // pred_region
      %75 = dma.done [#allocation3], 128
    $region33: #{tpu_custom_call.1} parent=1 // pred_fallthru
      _
    // Predicated region
    $region34: #{tpu_custom_call.1} parent=1 // pred_check
      _
    $region35: #{tpu_custom_call.1} parent=1 // pred_check_branch
      %77 = sbr.rel (0) target = $region37
    $region36: #{tpu_custom_call.1} parent=1 // pred_region
      %79 = dma.done [#allocation6], 512
    $region37: #{tpu_custom_call.1} parent=1 // pred_fallthru
      _
    // Predicated region
    $region38: #{tpu_custom_call.1} parent=1 // pred_check
      _
    $region39: #{tpu_custom_call.1} parent=1 // pred_check_branch
      %81 = sbr.rel (0) target = $region41
    $region40: #{tpu_custom_call.1} parent=1 // pred_region
      %83 = dma.done [#allocation6], 2048
    $region41: #{tpu_custom_call.1} parent=1 // pred_fallthru
      _
    // Predicated region
    $region42: #{tpu_custom_call.1} parent=1 // pred_check
      _
    $region43: #{tpu_custom_call.1} parent=1 // pred_check_branch
      %85 = sbr.rel (0) target = $region45
    $region44: #{tpu_custom_call.1} parent=1 // pred_region
      %87 = dma.done [#allocation9], 2048
    $region45: #{tpu_custom_call.1} parent=1 // pred_fallthru
      _
    %v88 = vld [vmem:[#allocation2] sm:$0xff]
    %v89 = vld [vmem:[#allocation5] sm:$0xff]
    %v90 = vld [vmem:[#allocation5 + $0x8] sm:$0xff]
    %v91 = vld [vmem:[#allocation5 + $0x10] sm:$0xff]
    %v92 = vld [vmem:[#allocation5 + $0x18] sm:$0xff]
    %v93 = vld [vmem:[%s2] sm:$0x1]
    %v95 = vperm.slane %v93, 0
    %vm97 = vcmask 261120
    %v99 = vsel %vm97, %v88, 0
    %101 = vmatpush.msra.mxu0 0.0
    %102 = vmatpush.msra.mxu0 0.0
    %103 = vmatpush.msra.mxu0 0.0
    %104 = vmatpush.msra.mxu0 0.0
    %105 = vmatpush.msra.mxu0 0.0
    %106 = vmatpush.msra.mxu0 0.0
    %107 = vmatpush.msra.mxu0 0.0
    %108 = vmatpush.msra.mxu0 0.0
    %109 = vmatpush.msra.mxu0 0.0
    %110 = vmatpush.msra.mxu0 0.0
    %111 = vmatpush.msra.mxu0 0.0
    %112 = vmatpush.msra.mxu0 0.0
    %113 = vmatpush.msra.mxu0 %v92
    %114 = vmatpush.msra.mxu0 %v91
    %115 = vmatpush.msra.mxu0 %v90
    %116 = vmatpush.msra.mxu0 %v89
    %117 = vmatmul.f32.gmra.mxu0 %v99
    %v118 = vpop.f32.mrf.mxu0
    %v119 = vadd.f32 %v95, %v118
    %120 = vdwg.mxu0
    %v121 = vmax.f32 %v119, 0.0
    %v122 = vld [vmem:[#allocation7] sm:$0xff]
    %v123 = vld [vmem:[#allocation7 + $0x8] sm:$0xff]
    %v124 = vld [vmem:[#allocation7 + $0x10] sm:$0xff]
    %v125 = vld [vmem:[#allocation7 + $0x18] sm:$0xff]
    %v126 = vld [vmem:[#allocation7 + $0x20] sm:$0xff]
    %v127 = vld [vmem:[#allocation7 + $0x28] sm:$0xff]
    %v128 = vld [vmem:[#allocation7 + $0x30] sm:$0xff]
    %v129 = vld [vmem:[#allocation7 + $0x38] sm:$0xff]
    %v130 = vld [vmem:[#allocation7 + $0x40] sm:$0xff]
    %v131 = vld [vmem:[#allocation7 + $0x48] sm:$0xff]
    %v132 = vld [vmem:[#allocation7 + $0x50] sm:$0xff]
    %v133 = vld [vmem:[#allocation7 + $0x58] sm:$0xff]
    %v134 = vld [vmem:[#allocation7 + $0x60] sm:$0xff]
    %v135 = vld [vmem:[#allocation7 + $0x68] sm:$0xff]
    %v136 = vld [vmem:[#allocation7 + $0x70] sm:$0xff]
    %v137 = vld [vmem:[#allocation7 + $0x78] sm:$0xff]
    %v138 = vld [vmem:[%s4] sm:$0x1]
    %v140 = vperm.slane %v138, 0
    %142 = vmatpush.msra.mxu0 %v137
    %143 = vmatpush.msra.mxu0 %v136
    %144 = vmatpush.msra.mxu0 %v135
    %145 = vmatpush.msra.mxu0 %v134
    %146 = vmatpush.msra.mxu0 %v133
    %147 = vmatpush.msra.mxu0 %v132
    %148 = vmatpush.msra.mxu0 %v131
    %149 = vmatpush.msra.mxu0 %v130
    %150 = vmatpush.msra.mxu0 %v129
    %151 = vmatpush.msra.mxu0 %v128
    %152 = vmatpush.msra.mxu0 %v127
    %153 = vmatpush.msra.mxu0 %v126
    %154 = vmatpush.msra.mxu0 %v125
    %155 = vmatpush.msra.mxu0 %v124
    %156 = vmatpush.msra.mxu0 %v123
    %157 = vmatpush.msra.mxu0 %v122
    %158 = vmatmul.f32.gmra.mxu0 %v121
    %v159 = vpop.f32.mrf.mxu0
    %v160 = vadd.f32 %v140, %v159
    %161 = vdwg.mxu0
    %v162 = vmax.f32 %v160, 0.0
    %v163 = vld [vmem:[#allocation8] sm:$0xff]
    %v164 = vld [vmem:[#allocation8 + $0x8] sm:$0xff]
    %v165 = vld [vmem:[#allocation8 + $0x10] sm:$0xff]
    %v166 = vld [vmem:[#allocation8 + $0x18] sm:$0xff]
    %v167 = vld [vmem:[#allocation8 + $0x20] sm:$0xff]
    %v168 = vld [vmem:[#allocation8 + $0x28] sm:$0xff]
    %v169 = vld [vmem:[#allocation8 + $0x30] sm:$0xff]
    %v170 = vld [vmem:[#allocation8 + $0x38] sm:$0xff]
    %v171 = vld [vmem:[#allocation8 + $0x40] sm:$0xff]
    %v172 = vld [vmem:[#allocation8 + $0x48] sm:$0xff]
    %v173 = vld [vmem:[#allocation8 + $0x50] sm:$0xff]
    %v174 = vld [vmem:[#allocation8 + $0x58] sm:$0xff]
    %v175 = vld [vmem:[#allocation8 + $0x60] sm:$0xff]
    %v176 = vld [vmem:[#allocation8 + $0x68] sm:$0xff]
    %v177 = vld [vmem:[#allocation8 + $0x70] sm:$0xff]
    %v178 = vld [vmem:[#allocation8 + $0x78] sm:$0xff]
    %v179 = vld [vmem:[%s6] sm:$0x1]
    %v181 = vperm.slane %v179, 0
    %183 = vmatpush.msra.mxu0 %v178
    %184 = vmatpush.msra.mxu0 %v177
    %185 = vmatpush.msra.mxu0 %v176
    %186 = vmatpush.msra.mxu0 %v175
    %187 = vmatpush.msra.mxu0 %v174
    %188 = vmatpush.msra.mxu0 %v173
    %189 = vmatpush.msra.mxu0 %v172
    %190 = vmatpush.msra.mxu0 %v171
    %191 = vmatpush.msra.mxu0 %v170
    %192 = vmatpush.msra.mxu0 %v169
    %193 = vmatpush.msra.mxu0 %v168
    %194 = vmatpush.msra.mxu0 %v167
    %195 = vmatpush.msra.mxu0 %v166
    %196 = vmatpush.msra.mxu0 %v165
    %197 = vmatpush.msra.mxu0 %v164
    %198 = vmatpush.msra.mxu0 %v163
    %199 = vmatmul.f32.gmra.mxu0 %v162
    %v200 = vpop.f32.mrf.mxu0
    %v201 = vadd.f32 %v181, %v200
    %202 = vdwg.mxu0
    %v203 = vmax.f32 %v201, 0.0
    %204 = vst [vmem:[#allocation10] sm:$0xff] %v203
    // Predicated region
    $region46: #{tpu_custom_call.1} parent=1 // pred_check
      _
    $region47: #{tpu_custom_call.1} parent=1 // pred_check_branch
      %206 = sbr.rel (0) target = $region49
    $region48: #{tpu_custom_call.1} parent=1 // pred_region
      %208 = vsyncadd [#allocation4], 0
      %s210 = sshll.u32 [#allocation10], 4
      %s211 = int_to_ptr.vmem [resolvable:$true] %s210
      %s212 = sshll.u32 %s7, 4
      %s213 = int_to_ptr.hbm [resolvable:$true] %s212
      %215 = dma.vmem_to_hbm [thread:$0]  %s211, 128, %s213, [#allocation4]
    $region49: #{tpu_custom_call.1} parent=1 // pred_fallthru
      _
    // Predicated region
    $region50: #{tpu_custom_call.1} parent=1 // pred_check
      _
    $region51: #{tpu_custom_call.1} parent=1 // pred_check_branch
      %217 = sbr.rel (0) target = $region53
    $region52: #{tpu_custom_call.1} parent=1 // pred_region
      %219 = dma.done [#allocation4], 128
    $region53: #{tpu_custom_call.1} parent=1 // pred_fallthru
      _
    %220 = vsyncpa [#allocation3], 1
    %221 = vsyncpa [#allocation6], 1
    %222 = vsyncpa [#allocation9], 1
    %223 = vsyncpa [#allocation4], 1

// kernel: tpu_custom_call.1
$region0: #{tpu_custom_call.1}
  #allocation0 [shape = 'u32[]', space=smem, size = 0x4, offset = 0x4, fixed_abs, tag = 'smem constant byte address 0x4 - core index']
  #allocation1 [shape = 'u32[72,128]{1,0:T(1,128)}', space=vmem, size = 0x9000, scoped, tag = 'internal scratch']
  %s0 = inlined_call_operand.hbm [shape: f32[8,32], index: 0, kind: input, shape index: {}]
  %s1 = inlined_call_operand.hbm [shape: f32[32,128], index: 1, kind: input, shape index: {}]
  %s2 = inlined_call_operand.vmem [shape: f32[1,128], index: 2, kind: input, shape index: {}]
  %s3 = inlined_call_operand.hbm [shape: f32[128,128], index: 3, kind: input, shape index: {}]
  %s4 = inlined_call_operand.vmem [shape: f32[1,128], index: 4, kind: input, shape index: {}]
  %s5 = inlined_call_operand.hbm [shape: f32[128,128], index: 5, kind: input, shape index: {}]
  %s6 = inlined_call_operand.vmem [shape: f32[1,128], index: 6, kind: input, shape index: {}]
  %s7 = inlined_call_operand.hbm [shape: f32[8,128], index: 7, kind: output, shape index: {}]
  %s8 = sld [smem:[#allocation0]]
  $region54: #{tpu_custom_call.1} parent=0
    _
  %s10 = ssub.s32 1, %s8
  %s11 = scalar_select 0, %s10, %s8
  $region1: #{tpu_custom_call.1} parent=0
    #allocation2 [shape = 'u8[4096]{0}', space=vmem, size = 0x1000, scoped, tag = 'input window, operand 0, single buffered']
    #allocation3 [shape = 's32[1]{0}', space=sflag, size = 0x4, scoped, tag = 'scoped memory for tpu_custom_call.1']
    #allocation4 [shape = 's32[1]{0}', space=sflag, size = 0x4, scoped, tag = 'scoped memory for tpu_custom_call.1']
    #allocation5 [shape = 'u8[16384]{0}', space=vmem, size = 0x4000, scoped, tag = 'input window, operand 1, single buffered']
    #allocation6 [shape = 's32[1]{0}', space=sflag, size = 0x4, scoped, tag = 'scoped memory for tpu_custom_call.1']
    #allocation7 [shape = 'u8[65536]{0}', space=vmem, size = 0x10000, scoped, tag = 'input window, operand 3, single buffered']
    #allocation8 [shape = 'u8[65536]{0}', space=vmem, size = 0x10000, scoped, tag = 'input window, operand 5, single buffered']
    #allocation9 [shape = 's32[1]{0}', space=sflag, size = 0x4, scoped, tag = 'scoped memory for tpu_custom_call.1']
    #allocation10 [shape = 'u8[4096]{0}', space=vmem, size = 0x1000, scoped, tag = 'output window, operand 0, single buffered']
    %12 = vsyncpa [#allocation3], 0
    %13 = vsyncpa [#allocation6], 0
    %14 = vsyncpa [#allocation9], 0
    %15 = vsyncpa [#allocation4], 0
    // Predicated region
    $region2: #{tpu_custom_call.1} parent=1 // pred_check
      _
    $region3: #{tpu_custom_call.1} parent=1 // pred_check_branch
      %17 = sbr.rel (0) target = $region5
    $region4: #{tpu_custom_call.1} parent=1 // pred_region
      %19 = vsyncadd [#allocation3], 0
      %s21 = sshll.u32 %s0, 4
      %s22 = int_to_ptr.hbm [resolvable:$true] %s21
      %s23 = sshll.u32 [#allocation2], 4
      %s24 = int_to_ptr.vmem [resolvable:$true] %s23
      %26 = dma.hbm_to_vmem [thread:$0]  %s22, 128, %s24, [#allocation3]
    $region5: #{tpu_custom_call.1} parent=1 // pred_fallthru
      _
    // Predicated region
    $region6: #{tpu_custom_call.1} parent=1 // pred_check
      _
    $region7: #{tpu_custom_call.1} parent=1 // pred_check_branch
      %28 = sbr.rel (0) target = $region9
    $region8: #{tpu_custom_call.1} parent=1 // pred_region
      %30 = vsyncadd [#allocation6], 0
      %s31 = sshll.u32 %s1, 4
      %s32 = int_to_ptr.hbm [resolvable:$true] %s31
      %s33 = sshll.u32 [#allocation5], 4
      %s34 = int_to_ptr.vmem [resolvable:$true] %s33
      %39 = dma.hbm_to_vmem [thread:$0]  %s32, 512, %s34, [#allocation6], 128, 128, 8
    $region9: #{tpu_custom_call.1} parent=1 // pred_fallthru
      _
    // Predicated region
    $region10: #{tpu_custom_call.1} parent=1 // pred_check
      _
    $region11: #{tpu_custom_call.1} parent=1 // pred_check_branch
      %41 = sbr.rel (0) target = $region13
    $region12: #{tpu_custom_call.1} parent=1 // pred_region
      _
    $region13: #{tpu_custom_call.1} parent=1 // pred_fallthru
      _
    // Predicated region
    $region14: #{tpu_custom_call.1} parent=1 // pred_check
      _
    $region15: #{tpu_custom_call.1} parent=1 // pred_check_branch
      %43 = sbr.rel (0) target = $region17
    $region16: #{tpu_custom_call.1} parent=1 // pred_region
      %45 = vsyncadd [#allocation6], 0
      %s46 = sshll.u32 %s3, 4
      %s47 = int_to_ptr.hbm [resolvable:$true] %s46
      %s48 = sshll.u32 [#allocation7], 4
      %s49 = int_to_ptr.vmem [resolvable:$true] %s48
      %54 = dma.hbm_to_vmem [thread:$0]  %s47, 2048, %s49, [#allocation6], 128, 128, 8
    $region17: #{tpu_custom_call.1} parent=1 // pred_fallthru
      _
    // Predicated region
    $region18: #{tpu_custom_call.1} parent=1 // pred_check
      _
    $region19: #{tpu_custom_call.1} parent=1 // pred_check_branch
      %56 = sbr.rel (0) target = $region21
    $region20: #{tpu_custom_call.1} parent=1 // pred_region
      _
    $region21: #{tpu_custom_call.1} parent=1 // pred_fallthru
      _
    // Predicated region
    $region22: #{tpu_custom_call.1} parent=1 // pred_check
      _
    $region23: #{tpu_custom_call.1} parent=1 // pred_check_branch
      %58 = sbr.rel (0) target = $region25
    $region24: #{tpu_custom_call.1} parent=1 // pred_region
      %60 = vsyncadd [#allocation9], 0
      %s61 = sshll.u32 %s5, 4
      %s62 = int_to_ptr.hbm [resolvable:$true] %s61
      %s63 = sshll.u32 [#allocation8], 4
      %s64 = int_to_ptr.vmem [resolvable:$true] %s63
      %69 = dma.hbm_to_vmem [thread:$0]  %s62, 2048, %s64, [#allocation9], 128, 128, 8
    $region25: #{tpu_custom_call.1} parent=1 // pred_fallthru
      _
    // Predicated region
    $region26: #{tpu_custom_call.1} parent=1 // pred_check
      _
    $region27: #{tpu_custom_call.1} parent=1 // pred_check_branch
      %71 = sbr.rel (0) target = $region29
    $region28: #{tpu_custom_call.1} parent=1 // pred_region
      _
    $region29: #{tpu_custom_call.1} parent=1 // pred_fallthru
      _
    // Predicated region
    $region30: #{tpu_custom_call.1} parent=1 // pred_check
      _
    $region31: #{tpu_custom_call.1} parent=1 // pred_check_branch
      %73 = sbr.rel (0) target = $region33
    $region32: #{tpu_custom_call.1} parent=1 // pred_region
      %75 = dma.done [#allocation3], 128
    $region33: #{tpu_custom_call.1} parent=1 // pred_fallthru
      _
    // Predicated region
    $region34: #{tpu_custom_call.1} parent=1 // pred_check
      _
    $region35: #{tpu_custom_call.1} parent=1 // pred_check_branch
      %77 = sbr.rel (0) target = $region37
    $region36: #{tpu_custom_call.1} parent=1 // pred_region
      %79 = dma.done [#allocation6], 512
    $region37: #{tpu_custom_call.1} parent=1 // pred_fallthru
      _
    // Predicated region
    $region38: #{tpu_custom_call.1} parent=1 // pred_check
      _
    $region39: #{tpu_custom_call.1} parent=1 // pred_check_branch
      %81 = sbr.rel (0) target = $region41
    $region40: #{tpu_custom_call.1} parent=1 // pred_region
      %83 = dma.done [#allocation6], 2048
    $region41: #{tpu_custom_call.1} parent=1 // pred_fallthru
      _
    // Predicated region
    $region42: #{tpu_custom_call.1} parent=1 // pred_check
      _
    $region43: #{tpu_custom_call.1} parent=1 // pred_check_branch
      %85 = sbr.rel (0) target = $region45
    $region44: #{tpu_custom_call.1} parent=1 // pred_region
      %87 = dma.done [#allocation9], 2048
    $region45: #{tpu_custom_call.1} parent=1 // pred_fallthru
      _
    %v88 = vld [vmem:[#allocation2] sm:$0xff]
    %v89 = vld [vmem:[#allocation5] sm:$0xff]
    %v90 = vld [vmem:[#allocation5 + $0x8] sm:$0xff]
    %v91 = vld [vmem:[#allocation5 + $0x10] sm:$0xff]
    %v92 = vld [vmem:[#allocation5 + $0x18] sm:$0xff]
    %v93 = vld [vmem:[%s2] sm:$0x1]
    %v95 = vperm.slane %v93, 0
    %vm97 = vcmask 261120
    %v99 = vsel %vm97, %v88, 0
    %101 = vmatpush.msra.mxu0 0.0
    %102 = vmatpush.msra.mxu0 0.0
    %103 = vmatpush.msra.mxu0 0.0
    %104 = vmatpush.msra.mxu0 0.0
    %105 = vmatpush.msra.mxu0 0.0
    %106 = vmatpush.msra.mxu0 0.0
    %107 = vmatpush.msra.mxu0 0.0
    %108 = vmatpush.msra.mxu0 0.0
    %109 = vmatpush.msra.mxu0 0.0
    %110 = vmatpush.msra.mxu0 0.0
    %111 = vmatpush.msra.mxu0 0.0
    %112 = vmatpush.msra.mxu0 0.0
    %113 = vmatpush.msra.mxu0 %v92
    %114 = vmatpush.msra.mxu0 %v91
    %115 = vmatpush.msra.mxu0 %v90
    %116 = vmatpush.msra.mxu0 %v89
    %117 = vmatmul.f32.gmra.mxu0 %v99
    %v118 = vpop.f32.mrf.mxu0
    %v119 = vadd.f32 %v95, %v118
    %120 = vdwg.mxu0
    %v121 = vmax.f32 %v119, 0.0
    %v122 = vld [vmem:[#allocation7] sm:$0xff]
    %v123 = vld [vmem:[#allocation7 + $0x8] sm:$0xff]
    %v124 = vld [vmem:[#allocation7 + $0x10] sm:$0xff]
    %v125 = vld [vmem:[#allocation7 + $0x18] sm:$0xff]
    %v126 = vld [vmem:[#allocation7 + $0x20] sm:$0xff]
    %v127 = vld [vmem:[#allocation7 + $0x28] sm:$0xff]
    %v128 = vld [vmem:[#allocation7 + $0x30] sm:$0xff]
    %v129 = vld [vmem:[#allocation7 + $0x38] sm:$0xff]
    %v130 = vld [vmem:[#allocation7 + $0x40] sm:$0xff]
    %v131 = vld [vmem:[#allocation7 + $0x48] sm:$0xff]
    %v132 = vld [vmem:[#allocation7 + $0x50] sm:$0xff]
    %v133 = vld [vmem:[#allocation7 + $0x58] sm:$0xff]
    %v134 = vld [vmem:[#allocation7 + $0x60] sm:$0xff]
    %v135 = vld [vmem:[#allocation7 + $0x68] sm:$0xff]
    %v136 = vld [vmem:[#allocation7 + $0x70] sm:$0xff]
    %v137 = vld [vmem:[#allocation7 + $0x78] sm:$0xff]
    %v138 = vld [vmem:[%s4] sm:$0x1]
    %v140 = vperm.slane %v138, 0
    %142 = vmatpush.msra.mxu0 %v137
    %143 = vmatpush.msra.mxu0 %v136
    %144 = vmatpush.msra.mxu0 %v135
    %145 = vmatpush.msra.mxu0 %v134
    %146 = vmatpush.msra.mxu0 %v133
    %147 = vmatpush.msra.mxu0 %v132
    %148 = vmatpush.msra.mxu0 %v131
    %149 = vmatpush.msra.mxu0 %v130
    %150 = vmatpush.msra.mxu0 %v129
    %151 = vmatpush.msra.mxu0 %v128
    %152 = vmatpush.msra.mxu0 %v127
    %153 = vmatpush.msra.mxu0 %v126
    %154 = vmatpush.msra.mxu0 %v125
    %155 = vmatpush.msra.mxu0 %v124
    %156 = vmatpush.msra.mxu0 %v123
    %157 = vmatpush.msra.mxu0 %v122
    %158 = vmatmul.f32.gmra.mxu0 %v121
    %v159 = vpop.f32.mrf.mxu0
    %v160 = vadd.f32 %v140, %v159
    %161 = vdwg.mxu0
    %v162 = vmax.f32 %v160, 0.0
    %v163 = vld [vmem:[#allocation8] sm:$0xff]
    %v164 = vld [vmem:[#allocation8 + $0x8] sm:$0xff]
    %v165 = vld [vmem:[#allocation8 + $0x10] sm:$0xff]
    %v166 = vld [vmem:[#allocation8 + $0x18] sm:$0xff]
    %v167 = vld [vmem:[#allocation8 + $0x20] sm:$0xff]
    %v168 = vld [vmem:[#allocation8 + $0x28] sm:$0xff]
    %v169 = vld [vmem:[#allocation8 + $0x30] sm:$0xff]
    %v170 = vld [vmem:[#allocation8 + $0x38] sm:$0xff]
    %v171 = vld [vmem:[#allocation8 + $0x40] sm:$0xff]
    %v172 = vld [vmem:[#allocation8 + $0x48] sm:$0xff]
    %v173 = vld [vmem:[#allocation8 + $0x50] sm:$0xff]
    %v174 = vld [vmem:[#allocation8 + $0x58] sm:$0xff]
    %v175 = vld [vmem:[#allocation8 + $0x60] sm:$0xff]
    %v176 = vld [vmem:[#allocation8 + $0x68] sm:$0xff]
    %v177 = vld [vmem:[#allocation8 + $0x70] sm:$0xff]
    %v178 = vld [vmem:[#allocation8 + $0x78] sm:$0xff]
    %v179 = vld [vmem:[%s6] sm:$0x1]
    %v181 = vperm.slane %v179, 0
    %183 = vmatpush.msra.mxu0 %v178
    %184 = vmatpush.msra.mxu0 %v177
    %185 = vmatpush.msra.mxu0 %v176
    %186 = vmatpush.msra.mxu0 %v175
    %187 = vmatpush.msra.mxu0 %v174
    %188 = vmatpush.msra.mxu0 %v173
    %189 = vmatpush.msra.mxu0 %v172
    %190 = vmatpush.msra.mxu0 %v171
    %191 = vmatpush.msra.mxu0 %v170
    %192 = vmatpush.msra.mxu0 %v169
    %193 = vmatpush.msra.mxu0 %v168
    %194 = vmatpush.msra.mxu0 %v167
    %195 = vmatpush.msra.mxu0 %v166
    %196 = vmatpush.msra.mxu0 %v165
    %197 = vmatpush.msra.mxu0 %v164
    %198 = vmatpush.msra.mxu0 %v163
    %199 = vmatmul.f32.gmra.mxu0 %v162
    %v200 = vpop.f32.mrf.mxu0
    %v201 = vadd.f32 %v181, %v200
    %202 = vdwg.mxu0
    %v203 = vmax.f32 %v201, 0.0
    %204 = vst [vmem:[#allocation10] sm:$0xff] %v203
    // Predicated region
    $region46: #{tpu_custom_call.1} parent=1 // pred_check
      _
    $region47: #{tpu_custom_call.1} parent=1 // pred_check_branch
      %206 = sbr.rel (0) target = $region49
    $region48: #{tpu_custom_call.1} parent=1 // pred_region
      %208 = vsyncadd [#allocation4], 0
      %s210 = sshll.u32 [#allocation10], 4
      %s211 = int_to_ptr.vmem [resolvable:$true] %s210
      %s212 = sshll.u32 %s7, 4
      %s213 = int_to_ptr.hbm [resolvable:$true] %s212
      %215 = dma.vmem_to_hbm [thread:$0]  %s211, 128, %s213, [#allocation4]
    $region49: #{tpu_custom_call.1} parent=1 // pred_fallthru
      _
    // Predicated region
    $region50: #{tpu_custom_call.1} parent=1 // pred_check
      _
    $region51: #{tpu_custom_call.1} parent=1 // pred_check_branch
      %217 = sbr.rel (0) target = $region53
    $region52: #{tpu_custom_call.1} parent=1 // pred_region
      %219 = dma.done [#allocation4], 128
    $region53: #{tpu_custom_call.1} parent=1 // pred_fallthru
      _
    %220 = vsyncpa [#allocation3], 1
    %221 = vsyncpa [#allocation6], 1
    %222 = vsyncpa [#allocation9], 1
    %223 = vsyncpa [#allocation4], 1

</llo_original>
